<compile_context>
chip_gen: v5e
topology: v5e:2x2
jax: 0.10.0
libtpu: 0.0.40
codegen_flags: <defaults>
</compile_context>

<pallas_src>
import jax
import jax.numpy as jnp
from jax.experimental import pallas as pl
from jax.experimental.pallas import tpu as pltpu


def classification_head_kernel(feat_ref, e1_ref, e2_ref,
                               w_cls_ref, b_cls_ref,
                               w_ent_ref, b_ent_ref,
                               w_out_ref, b_out_ref,
                               out_ref):
    feats = feat_ref[...].astype(jnp.float32)          # (TB, S, H)
    e1 = e1_ref[...]                                    # (TB, S) f32 mask weights
    e2 = e2_ref[...]

    # entity_average: mask-weighted sum over sequence divided by count of nonzero mask
    # entries (matches torch.bmm(mask, hidden) / (mask != 0).sum()).
    e1_len = jnp.sum((e1 != 0).astype(jnp.float32), axis=1, keepdims=True)   # (TB, 1)
    e2_len = jnp.sum((e2 != 0).astype(jnp.float32), axis=1, keepdims=True)
    e1_avg = jnp.sum(e1[:, :, None] * feats, axis=1) / e1_len                # (TB, H)
    e2_avg = jnp.sum(e2[:, :, None] * feats, axis=1) / e2_len                # (TB, H)

    pooled = feats[:, 0, :]                             # (TB, H) [CLS] token

    w_cls = w_cls_ref[...]                              # (H, H), resident
    w_ent = w_ent_ref[...]                              # (H, H), resident

    # FCLayer = dropout (identity in eval) -> tanh -> linear
    cls_h = jnp.dot(jnp.tanh(pooled), w_cls,
                    preferred_element_type=jnp.float32) + b_cls_ref[...]
    e1_h = jnp.dot(jnp.tanh(e1_avg), w_ent,
                   preferred_element_type=jnp.float32) + b_ent_ref[...]
    e2_h = jnp.dot(jnp.tanh(e2_avg), w_ent,
                   preferred_element_type=jnp.float32) + b_ent_ref[...]

    # out_proj on the implicit concat [cls | e1 | e2]: row-split the (3H, L) weight
    # instead of materializing a lane-axis concat.
    H = pooled.shape[-1]
    logits = (jnp.dot(cls_h, w_out_ref[0:H, :], preferred_element_type=jnp.float32)
              + jnp.dot(e1_h, w_out_ref[H:2 * H, :], preferred_element_type=jnp.float32)
              + jnp.dot(e2_h, w_out_ref[2 * H:3 * H, :], preferred_element_type=jnp.float32)
              + b_out_ref[...])
    out_ref[...] = logits.astype(out_ref.dtype)
    # TODO(synk): dropout is identity (eval mode); training-mode dropout not implemented.


def roberta_classification_head(features, e1_mask, e2_mask, params, *, block_b=None):
    """features: (B, S, H); e1_mask, e2_mask: (B, S); returns logits (B, num_labels)."""
    B, S, H = features.shape
    L = params["w_out"].shape[1]
    if block_b is None:
        block_b = B if B <= 8 else 8                    # (8,128) rule: full dim or mult of 8
    grid = (pl.cdiv(B, block_b),)

    row_map3 = lambda i: (i, 0, 0)
    row_map2 = lambda i: (i, 0)
    const2 = lambda i: (0, 0)                            # weights stay resident across steps

    return pl.pallas_call(
        classification_head_kernel,
        out_shape=jax.ShapeDtypeStruct((B, L), jnp.float32),
        grid=grid,
        in_specs=[
            pl.BlockSpec((block_b, S, H), row_map3),     # features, tiled over batch
            pl.BlockSpec((block_b, S), row_map2),        # e1_mask
            pl.BlockSpec((block_b, S), row_map2),        # e2_mask
            pl.BlockSpec((H, H), const2),                # W_cls
            pl.BlockSpec((1, H), const2),                # b_cls
            pl.BlockSpec((H, H), const2),                # W_ent (shared entity_fc)
            pl.BlockSpec((1, H), const2),                # b_ent
            pl.BlockSpec((3 * H, L), const2),            # W_out
            pl.BlockSpec((1, L), const2),                # b_out
        ],
        out_specs=pl.BlockSpec((block_b, L), row_map2),
        compiler_params=pltpu.CompilerParams(
            dimension_semantics=("parallel",),
            vmem_limit_bytes=32 * 1024 * 1024,
        ),
    )(
        features.astype(jnp.float32),
        e1_mask.astype(jnp.float32),
        e2_mask.astype(jnp.float32),
        params["w_cls"], params["b_cls"],
        params["w_ent"], params["b_ent"],
        params["w_out"], params["b_out"],
    )


def init_params(key, hidden, num_labels):
    k1, k2, k3 = jax.random.split(key, 3)
    # weights stored [in, out] (i.e. PyTorch nn.Linear weight transposed)
    w_cls = jax.random.normal(k1, (hidden, hidden), jnp.float32) * 0.02
    w_ent = jax.random.normal(k2, (hidden, hidden), jnp.float32) * 0.02
    w_out = jax.random.normal(k3, (3 * hidden, num_labels), jnp.float32) * 0.02
    b_cls = jnp.zeros((1, hidden), jnp.float32)
    b_ent = jnp.full((1, hidden), 0.01, jnp.float32)
    b_out = jnp.full((1, num_labels), -0.02, jnp.float32)
    return dict(w_cls=w_cls, b_cls=b_cls, w_ent=w_ent, b_ent=b_ent,
                w_out=w_out, b_out=b_out)


def reference_head(features, e1_mask, e2_mask, params):
    """Pure-JAX reference mirroring the PyTorch forward (eval mode)."""
    def ent_avg(feats, m):
        m = m.astype(jnp.float32)
        length = jnp.sum((m != 0).astype(jnp.float32), axis=1, keepdims=True)
        return jnp.einsum("bs,bsh->bh", m, feats) / length

    e1_h = ent_avg(features, e1_mask)
    e2_h = ent_avg(features, e2_mask)
    pooled = features[:, 0, :]
    cls_h = jnp.tanh(pooled) @ params["w_cls"] + params["b_cls"]
    e1_o = jnp.tanh(e1_h) @ params["w_ent"] + params["b_ent"]
    e2_o = jnp.tanh(e2_h) @ params["w_ent"] + params["b_ent"]
    concat = jnp.concatenate([cls_h, e1_o, e2_o], axis=-1)
    return concat @ params["w_out"] + params["b_out"]


if __name__ == "__main__":
    # Small config consistent with the module: batch=2, seq=8, hidden=32, num_labels=4.
    B, S, H, L = 2, 8, 32, 4

    key = jax.random.PRNGKey(0)
    k_params, k_feat = jax.random.split(key, 2)

    params = init_params(k_params, H, L)
    features = jax.random.normal(k_feat, (B, S, H), jnp.float32)

    e1_mask = jnp.zeros((B, S), jnp.int32).at[0, 1:3].set(1).at[1, 2:5].set(1)
    e2_mask = jnp.zeros((B, S), jnp.int32).at[0, 4:6].set(1).at[1, 6:8].set(1)

    out = roberta_classification_head(features, e1_mask, e2_mask, params)
    out = jax.block_until_ready(out)

    ref = reference_head(features, e1_mask, e2_mask, params)
    assert out.shape == (B, L) and out.dtype == jnp.float32
    assert jnp.allclose(out, ref, atol=1e-4, rtol=1e-4), (out, ref)
    print("KERNEL_OK")
</pallas_src>

<mosaic_0001>
module attributes {stable_mosaic.version = 11 : i64} {
  func.func @classification_head_kernel(%arg0: i32, %arg1: memref<2x8x32xf32, #tpu.memory_space<vmem>>, %arg2: memref<2x8xf32, #tpu.memory_space<vmem>>, %arg3: memref<2x8xf32, #tpu.memory_space<vmem>>, %arg4: memref<32x32xf32, #tpu.memory_space<vmem>>, %arg5: memref<1x32xf32, #tpu.memory_space<vmem>>, %arg6: memref<32x32xf32, #tpu.memory_space<vmem>>, %arg7: memref<1x32xf32, #tpu.memory_space<vmem>>, %arg8: memref<96x4xf32, #tpu.memory_space<vmem>>, %arg9: memref<1x4xf32, #tpu.memory_space<vmem>>, %arg10: memref<2x4xf32, #tpu.memory_space<vmem>>) attributes {dimension_semantics = [#tpu.dimension_semantics<parallel>], iteration_bounds = array<i64: 1>, scalar_prefetch = 0 : i64, scratch_operands = 0 : i64, tpu.core_type = #tpu.core_type<tc>, window_params = [{transform_indices = @transform_0, window_bounds = array<i64: 2, 8, 32>}, {transform_indices = @transform_1, window_bounds = array<i64: 2, 8>}, {transform_indices = @transform_2, window_bounds = array<i64: 2, 8>}, {pipeline_mode = #tpu.pipeline_mode<synchronous>, transform_indices = @transform_3, window_bounds = array<i64: 32, 32>}, {pipeline_mode = #tpu.pipeline_mode<synchronous>, transform_indices = @transform_4, window_bounds = array<i64: 1, 32>}, {pipeline_mode = #tpu.pipeline_mode<synchronous>, transform_indices = @transform_5, window_bounds = array<i64: 32, 32>}, {pipeline_mode = #tpu.pipeline_mode<synchronous>, transform_indices = @transform_6, window_bounds = array<i64: 1, 32>}, {pipeline_mode = #tpu.pipeline_mode<synchronous>, transform_indices = @transform_7, window_bounds = array<i64: 96, 4>}, {pipeline_mode = #tpu.pipeline_mode<synchronous>, transform_indices = @transform_8, window_bounds = array<i64: 1, 4>}, {transform_indices = @transform_9, window_bounds = array<i64: 2, 4>}]} {
    %c0 = arith.constant 0 : index
    %c0_0 = arith.constant 0 : index
    %c0_1 = arith.constant 0 : index
    %0 = vector.load %arg1[%c0, %c0_0, %c0_1] : memref<2x8x32xf32, #tpu.memory_space<vmem>>, vector<2x8x32xf32>
    %c0_2 = arith.constant 0 : index
    %c0_3 = arith.constant 0 : index
    %1 = vector.load %arg2[%c0_2, %c0_3] : memref<2x8xf32, #tpu.memory_space<vmem>>, vector<2x8xf32>
    %c0_4 = arith.constant 0 : index
    %c0_5 = arith.constant 0 : index
    %2 = vector.load %arg3[%c0_4, %c0_5] : memref<2x8xf32, #tpu.memory_space<vmem>>, vector<2x8xf32>
    %cst = arith.constant 0.000000e+00 : f32
    %3 = vector.broadcast %cst : f32 to vector<2x8xf32>
    %4 = arith.cmpf one, %1, %3 : vector<2x8xf32>
    %5 = arith.extui %4 : vector<2x8xi1> to vector<2x8xi32>
    %6 = arith.sitofp %5 : vector<2x8xi32> to vector<2x8xf32>
    %cst_6 = arith.constant dense<0.000000e+00> : vector<2xf32>
    %7 = vector.multi_reduction <add>, %6, %cst_6 [1] : vector<2x8xf32> to vector<2xf32>
    %8 = vector.shape_cast %7 : vector<2xf32> to vector<2x1xf32>
    %cst_7 = arith.constant 0.000000e+00 : f32
    %9 = vector.broadcast %cst_7 : f32 to vector<2x8xf32>
    %10 = arith.cmpf one, %2, %9 : vector<2x8xf32>
    %11 = arith.extui %10 : vector<2x8xi1> to vector<2x8xi32>
    %12 = arith.sitofp %11 : vector<2x8xi32> to vector<2x8xf32>
    %cst_8 = arith.constant dense<0.000000e+00> : vector<2xf32>
    %13 = vector.multi_reduction <add>, %12, %cst_8 [1] : vector<2x8xf32> to vector<2xf32>
    %14 = vector.shape_cast %13 : vector<2xf32> to vector<2x1xf32>
    %15 = vector.shape_cast %1 : vector<2x8xf32> to vector<2x8x1xf32>
    %16 = vector.broadcast %15 : vector<2x8x1xf32> to vector<2x8x32xf32>
    %17 = arith.mulf %16, %0 : vector<2x8x32xf32>
    %cst_9 = arith.constant dense<0.000000e+00> : vector<2x32xf32>
    %18 = vector.multi_reduction <add>, %17, %cst_9 [1] : vector<2x8x32xf32> to vector<2x32xf32>
    %19 = vector.broadcast %8 : vector<2x1xf32> to vector<2x32xf32>
    %20 = arith.divf %18, %19 : vector<2x32xf32>
    %21 = vector.shape_cast %2 : vector<2x8xf32> to vector<2x8x1xf32>
    %22 = vector.broadcast %21 : vector<2x8x1xf32> to vector<2x8x32xf32>
    %23 = arith.mulf %22, %0 : vector<2x8x32xf32>
    %cst_10 = arith.constant dense<0.000000e+00> : vector<2x32xf32>
    %24 = vector.multi_reduction <add>, %23, %cst_10 [1] : vector<2x8x32xf32> to vector<2x32xf32>
    %25 = vector.broadcast %14 : vector<2x1xf32> to vector<2x32xf32>
    %26 = arith.divf %24, %25 : vector<2x32xf32>
    %27 = vector.extract_strided_slice %0 {offsets = [0, 0, 0], sizes = [2, 1, 32], strides = [1, 1, 1]} : vector<2x8x32xf32> to vector<2x1x32xf32>
    %28 = vector.shape_cast %27 : vector<2x1x32xf32> to vector<2x32xf32>
    %c0_11 = arith.constant 0 : index
    %c0_12 = arith.constant 0 : index
    %29 = vector.load %arg4[%c0_11, %c0_12] : memref<32x32xf32, #tpu.memory_space<vmem>>, vector<32x32xf32>
    %c0_13 = arith.constant 0 : index
    %c0_14 = arith.constant 0 : index
    %30 = vector.load %arg6[%c0_13, %c0_14] : memref<32x32xf32, #tpu.memory_space<vmem>>, vector<32x32xf32>
    %31 = math.tanh %28 : vector<2x32xf32>
    %cst_15 = arith.constant dense<0.000000e+00> : vector<2x32xf32>
    %32 = tpu.matmul %31, %29, %cst_15 {dimension_numbers = #tpu.dot_dimension_numbers<[1], [0], [0], [1], [0, 0, 1, 1], [], []>} : vector<2x32xf32>, vector<32x32xf32>, vector<2x32xf32> -> vector<2x32xf32>
    %c0_16 = arith.constant 0 : index
    %c0_17 = arith.constant 0 : index
    %33 = vector.load %arg5[%c0_16, %c0_17] : memref<1x32xf32, #tpu.memory_space<vmem>>, vector<1x32xf32>
    %34 = vector.broadcast %33 : vector<1x32xf32> to vector<2x32xf32>
    %35 = arith.addf %32, %34 : vector<2x32xf32>
    %36 = math.tanh %20 : vector<2x32xf32>
    %cst_18 = arith.constant dense<0.000000e+00> : vector<2x32xf32>
    %37 = tpu.matmul %36, %30, %cst_18 {dimension_numbers = #tpu.dot_dimension_numbers<[1], [0], [0], [1], [0, 0, 1, 1], [], []>} : vector<2x32xf32>, vector<32x32xf32>, vector<2x32xf32> -> vector<2x32xf32>
    %c0_19 = arith.constant 0 : index
    %c0_20 = arith.constant 0 : index
    %38 = vector.load %arg7[%c0_19, %c0_20] : memref<1x32xf32, #tpu.memory_space<vmem>>, vector<1x32xf32>
    %39 = vector.broadcast %38 : vector<1x32xf32> to vector<2x32xf32>
    %40 = arith.addf %37, %39 : vector<2x32xf32>
    %41 = math.tanh %26 : vector<2x32xf32>
    %cst_21 = arith.constant dense<0.000000e+00> : vector<2x32xf32>
    %42 = tpu.matmul %41, %30, %cst_21 {dimension_numbers = #tpu.dot_dimension_numbers<[1], [0], [0], [1], [0, 0, 1, 1], [], []>} : vector<2x32xf32>, vector<32x32xf32>, vector<2x32xf32> -> vector<2x32xf32>
    %c0_22 = arith.constant 0 : index
    %c0_23 = arith.constant 0 : index
    %43 = vector.load %arg7[%c0_22, %c0_23] : memref<1x32xf32, #tpu.memory_space<vmem>>, vector<1x32xf32>
    %44 = vector.broadcast %43 : vector<1x32xf32> to vector<2x32xf32>
    %45 = arith.addf %42, %44 : vector<2x32xf32>
    %c0_24 = arith.constant 0 : index
    %c0_25 = arith.constant 0 : index
    %46 = vector.load %arg8[%c0_24, %c0_25] : memref<96x4xf32, #tpu.memory_space<vmem>>, vector<32x4xf32>
    %cst_26 = arith.constant dense<0.000000e+00> : vector<2x4xf32>
    %47 = tpu.matmul %35, %46, %cst_26 {dimension_numbers = #tpu.dot_dimension_numbers<[1], [0], [0], [1], [0, 0, 1, 1], [], []>} : vector<2x32xf32>, vector<32x4xf32>, vector<2x4xf32> -> vector<2x4xf32>
    %c32 = arith.constant 32 : index
    %c0_27 = arith.constant 0 : index
    %48 = vector.load %arg8[%c32, %c0_27] : memref<96x4xf32, #tpu.memory_space<vmem>>, vector<32x4xf32>
    %cst_28 = arith.constant dense<0.000000e+00> : vector<2x4xf32>
    %49 = tpu.matmul %40, %48, %cst_28 {dimension_numbers = #tpu.dot_dimension_numbers<[1], [0], [0], [1], [0, 0, 1, 1], [], []>} : vector<2x32xf32>, vector<32x4xf32>, vector<2x4xf32> -> vector<2x4xf32>
    %50 = arith.addf %47, %49 : vector<2x4xf32>
    %c64 = arith.constant 64 : index
    %c0_29 = arith.constant 0 : index
    %51 = vector.load %arg8[%c64, %c0_29] : memref<96x4xf32, #tpu.memory_space<vmem>>, vector<32x4xf32>
    %cst_30 = arith.constant dense<0.000000e+00> : vector<2x4xf32>
    %52 = tpu.matmul %45, %51, %cst_30 {dimension_numbers = #tpu.dot_dimension_numbers<[1], [0], [0], [1], [0, 0, 1, 1], [], []>} : vector<2x32xf32>, vector<32x4xf32>, vector<2x4xf32> -> vector<2x4xf32>
    %53 = arith.addf %50, %52 : vector<2x4xf32>
    %c0_31 = arith.constant 0 : index
    %c0_32 = arith.constant 0 : index
    %54 = vector.load %arg9[%c0_31, %c0_32] : memref<1x4xf32, #tpu.memory_space<vmem>>, vector<1x4xf32>
    %55 = vector.broadcast %54 : vector<1x4xf32> to vector<2x4xf32>
    %56 = arith.addf %53, %55 : vector<2x4xf32>
    %c0_33 = arith.constant 0 : index
    %c0_34 = arith.constant 0 : index
    %57 = vector.load %arg10[%c0_33, %c0_34] : memref<2x4xf32, #tpu.memory_space<vmem>>, vector<2x4xf32>
    tpu.vector_store %arg10[%c0_33, %c0_34], %56 {strides = array<i32>} : memref<2x4xf32, #tpu.memory_space<vmem>>, vector<2x4xf32>,
    return
  }
  func.func @transform_0(%arg0: i32) -> (i32, i32, i32) {
    %c0_i32 = arith.constant 0 : i32
    %c0_i32_0 = arith.constant 0 : i32
    %c0_i32_1 = arith.constant 0 : i32
    return %arg0, %c0_i32, %c0_i32_0 : i32, i32, i32
  }
  func.func @transform_1(%arg0: i32) -> (i32, i32) {
    %c0_i32 = arith.constant 0 : i32
    %c0_i32_0 = arith.constant 0 : i32
    return %arg0, %c0_i32 : i32, i32
  }
  func.func @transform_2(%arg0: i32) -> (i32, i32) {
    %c0_i32 = arith.constant 0 : i32
    %c0_i32_0 = arith.constant 0 : i32
    return %arg0, %c0_i32 : i32, i32
  }
  func.func @transform_3(%arg0: i32) -> (i32, i32) {
    %c0_i32 = arith.constant 0 : i32
    %c0_i32_0 = arith.constant 0 : i32
    %c0_i32_1 = arith.constant 0 : i32
    return %c0_i32, %c0_i32_0 : i32, i32
  }
  func.func @transform_4(%arg0: i32) -> (i32, i32) {
    %c0_i32 = arith.constant 0 : i32
    %c0_i32_0 = arith.constant 0 : i32
    %c0_i32_1 = arith.constant 0 : i32
    return %c0_i32, %c0_i32_0 : i32, i32
  }
  func.func @transform_5(%arg0: i32) -> (i32, i32) {
    %c0_i32 = arith.constant 0 : i32
    %c0_i32_0 = arith.constant 0 : i32
    %c0_i32_1 = arith.constant 0 : i32
    return %c0_i32, %c0_i32_0 : i32, i32
  }
  func.func @transform_6(%arg0: i32) -> (i32, i32) {
    %c0_i32 = arith.constant 0 : i32
    %c0_i32_0 = arith.constant 0 : i32
    %c0_i32_1 = arith.constant 0 : i32
    return %c0_i32, %c0_i32_0 : i32, i32
  }
  func.func @transform_7(%arg0: i32) -> (i32, i32) {
    %c0_i32 = arith.constant 0 : i32
    %c0_i32_0 = arith.constant 0 : i32
    %c0_i32_1 = arith.constant 0 : i32
    return %c0_i32, %c0_i32_0 : i32, i32
  }
  func.func @transform_8(%arg0: i32) -> (i32, i32) {
    %c0_i32 = arith.constant 0 : i32
    %c0_i32_0 = arith.constant 0 : i32
    %c0_i32_1 = arith.constant 0 : i32
    return %c0_i32, %c0_i32_0 : i32, i32
  }
  func.func @transform_9(%arg0: i32) -> (i32, i32) {
    %c0_i32 = arith.constant 0 : i32
    %c0_i32_0 = arith.constant 0 : i32
    return %arg0, %c0_i32 : i32, i32
  }
}

</mosaic_0001>

<llo_original>
// kernel: tpu_custom_call.1
$region0: #{tpu_custom_call.1}
  #allocation0 [shape = 'u32[]', space=smem, size = 0x4, offset = 0x4, fixed_abs, tag = 'smem constant byte address 0x4 - core index']
  #allocation1 [shape = 'u32[72,128]{1,0:T(1,128)}', space=vmem, size = 0x9000, scoped, tag = 'internal scratch']
  %s0 = inlined_call_operand.vmem [shape: f32[2,8,32], index: 0, kind: input, shape index: {}]
  %s1 = inlined_call_operand.vmem [shape: f32[2,8], index: 1, kind: input, shape index: {}]
  %s2 = inlined_call_operand.vmem [shape: f32[2,8], index: 2, kind: input, shape index: {}]
  %s3 = inlined_call_operand.vmem [shape: f32[32,32], index: 3, kind: input, shape index: {}]
  %s4 = inlined_call_operand.vmem [shape: f32[1,32], index: 4, kind: input, shape index: {}]
  %s5 = inlined_call_operand.vmem [shape: f32[32,32], index: 5, kind: input, shape index: {}]
  %s6 = inlined_call_operand.vmem [shape: f32[1,32], index: 6, kind: input, shape index: {}]
  %s7 = inlined_call_operand.vmem [shape: f32[96,4], index: 7, kind: input, shape index: {}]
  %s8 = inlined_call_operand.vmem [shape: f32[1,4], index: 8, kind: input, shape index: {}]
  %s9 = inlined_call_operand.hbm [shape: f32[2,4], index: 9, kind: output, shape index: {}]
  %s10 = sld [smem:[#allocation0]]
  $region46: #{tpu_custom_call.1} parent=0
    _
  %s12 = ssub.s32 1, %s10
  %s13 = scalar_select 0, %s12, %s10
  $region1: #{tpu_custom_call.1} parent=0
    #allocation2 [shape = 'u8[1024]{0}', space=vmem, size = 0x400, scoped, tag = 'output window, operand 0, single buffered']
    #allocation3 [shape = 's32[1]{0}', space=sflag, size = 0x4, scoped, tag = 'scoped memory for tpu_custom_call.1']
    %14 = vsyncpa [#allocation3], 0
    // Predicated region
    $region2: #{tpu_custom_call.1} parent=1 // pred_check
      _
    $region3: #{tpu_custom_call.1} parent=1 // pred_check_branch
      %16 = sbr.rel (0) target = $region5
    $region4: #{tpu_custom_call.1} parent=1 // pred_region
      _
    $region5: #{tpu_custom_call.1} parent=1 // pred_fallthru
      _
    // Predicated region
    $region6: #{tpu_custom_call.1} parent=1 // pred_check
      _
    $region7: #{tpu_custom_call.1} parent=1 // pred_check_branch
      %18 = sbr.rel (0) target = $region9
    $region8: #{tpu_custom_call.1} parent=1 // pred_region
      _
    $region9: #{tpu_custom_call.1} parent=1 // pred_fallthru
      _
    // Predicated region
    $region10: #{tpu_custom_call.1} parent=1 // pred_check
      _
    $region11: #{tpu_custom_call.1} parent=1 // pred_check_branch
      %20 = sbr.rel (0) target = $region13
    $region12: #{tpu_custom_call.1} parent=1 // pred_region
      _
    $region13: #{tpu_custom_call.1} parent=1 // pred_fallthru
      _
    // Predicated region
    $region14: #{tpu_custom_call.1} parent=1 // pred_check
      _
    $region15: #{tpu_custom_call.1} parent=1 // pred_check_branch
      %22 = sbr.rel (0) target = $region17
    $region16: #{tpu_custom_call.1} parent=1 // pred_region
      _
    $region17: #{tpu_custom_call.1} parent=1 // pred_fallthru
      _
    // Predicated region
    $region18: #{tpu_custom_call.1} parent=1 // pred_check
      _
    $region19: #{tpu_custom_call.1} parent=1 // pred_check_branch
      %24 = sbr.rel (0) target = $region21
    $region20: #{tpu_custom_call.1} parent=1 // pred_region
      _
    $region21: #{tpu_custom_call.1} parent=1 // pred_fallthru
      _
    // Predicated region
    $region22: #{tpu_custom_call.1} parent=1 // pred_check
      _
    $region23: #{tpu_custom_call.1} parent=1 // pred_check_branch
      %26 = sbr.rel (0) target = $region25
    $region24: #{tpu_custom_call.1} parent=1 // pred_region
      _
    $region25: #{tpu_custom_call.1} parent=1 // pred_fallthru
      _
    // Predicated region
    $region26: #{tpu_custom_call.1} parent=1 // pred_check
      _
    $region27: #{tpu_custom_call.1} parent=1 // pred_check_branch
      %28 = sbr.rel (0) target = $region29
    $region28: #{tpu_custom_call.1} parent=1 // pred_region
      _
    $region29: #{tpu_custom_call.1} parent=1 // pred_fallthru
      _
    // Predicated region
    $region30: #{tpu_custom_call.1} parent=1 // pred_check
      _
    $region31: #{tpu_custom_call.1} parent=1 // pred_check_branch
      %30 = sbr.rel (0) target = $region33
    $region32: #{tpu_custom_call.1} parent=1 // pred_region
      _
    $region33: #{tpu_custom_call.1} parent=1 // pred_fallthru
      _
    // Predicated region
    $region34: #{tpu_custom_call.1} parent=1 // pred_check
      _
    $region35: #{tpu_custom_call.1} parent=1 // pred_check_branch
      %32 = sbr.rel (0) target = $region37
    $region36: #{tpu_custom_call.1} parent=1 // pred_region
      _
    $region37: #{tpu_custom_call.1} parent=1 // pred_fallthru
      _
    %v33 = vld [vmem:[%s0] sm:$0xff]
    %v34 = vld [vmem:[%s0 + $0x8] sm:$0xff]
    %v35 = vld [vmem:[%s1] sm:$0x3]
    %v36 = vld [vmem:[%s2] sm:$0x3]
    %vm37 = vcmp.ne.f32.partialorder %v35, 0.0
    %v38 = vsel %vm37, 1, 0
    %v39 = vcvt.s32.f32 %v38
    %vm40 = vcmask 58368
    %v41 = vsel %vm40, %v39, 0.0
    %42 = vadd.xlane.f32.xlu0 %v41
    %v43 = vpop.xlane.xlu0 %42
    %vm44 = vcmp.ne.f32.partialorder %v36, 0.0
    %v45 = vsel %vm44, 1, 0
    %v46 = vcvt.s32.f32 %v45
    %v47 = vsel %vm40, %v46, 0.0
    %48 = vadd.xlane.f32.xlu0 %v47
    %v49 = vpop.xlane.xlu0 %48
    %v50 = vperm.slane %v35, 0
    %v51 = vlaneseq
    %v52 = vshrl.u32 %v51, 7
    %54 = vset.pattern.permute.xlu0 %v52
    %55 = vperm.xlu0 %54, %v50
    %v56 = vpop.permute.xlu0 %55
    %v57 = vperm.slane %v35, 1
    %v58 = vlaneseq
    %v59 = vshrl.u32 %v58, 7
    %61 = vset.pattern.permute.xlu0 %v59
    %62 = vperm.xlu0 %61, %v57
    %v63 = vpop.permute.xlu0 %62
    %v64 = vmul.f32 %v56, %v33
    %v65 = vmul.f32 %v63, %v34
    %vm66 = vcmask 261120
    %v67 = vsel %vm66, %v64, 0.0
    %v68 = vrot.slane %v67, 4
    %v69 = vadd.f32 %v67, %v68
    %v70 = vrot.slane %v69, 2
    %v71 = vadd.f32 %v69, %v70
    %v72 = vrot.slane %v71, 1
    %v73 = vadd.f32 %v71, %v72
    %v74 = vsel %vm66, %v65, 0.0
    %v75 = vrot.slane %v74, 4
    %v76 = vadd.f32 %v74, %v75
    %v77 = vrot.slane %v76, 2
    %v78 = vadd.f32 %v76, %v77
    %v79 = vrot.slane %v78, 1
    %v80 = vadd.f32 %v78, %v79
    %v82 = vrot.slane %v43, 1
    %v85 = vrcp.pop %v43
    %v86 = vmul.f32 %v43, %v85
    %v87 = vsub.f32 1.0, %v86
    %v88 = vmul.f32 %v85, %v87
    %v89 = vadd.f32 %v85, %v88
    %vm90 = vweird.f32 %v43
    %vm91 = vweird.f32 %v85
    %vm92 = vmor %vm90, %vm91
    %v93 = vsel %vm92, %v85, %v89
    %v94 = vand.u32 2147483647, %v43
    %vm95 = vcmp.eq.f32.partialorder %v94, 8.507059e+37
    %v96 = vand.u32 %v43, 2147483648
    %v97 = vor.u32 1.1754944e-38, %v96
    %v98 = vsel %vm95, %v97, %v93
    %v99 = vmul.f32 %v73, %v98
    %v100 = vrcp.pop %v82
    %v101 = vmul.f32 %v82, %v100
    %v102 = vsub.f32 1.0, %v101
    %v103 = vmul.f32 %v100, %v102
    %v104 = vadd.f32 %v100, %v103
    %vm105 = vweird.f32 %v82
    %vm106 = vweird.f32 %v100
    %vm107 = vmor %vm105, %vm106
    %v108 = vsel %vm107, %v100, %v104
    %v109 = vand.u32 2147483647, %v82
    %vm110 = vcmp.eq.f32.partialorder %v109, 8.507059e+37
    %v111 = vand.u32 %v82, 2147483648
    %v112 = vor.u32 1.1754944e-38, %v111
    %v113 = vsel %vm110, %v112, %v108
    %v114 = vmul.f32 %v80, %v113
    %v115 = vperm.slane %v36, 0
    %v116 = vlaneseq
    %v117 = vshrl.u32 %v116, 7
    %119 = vset.pattern.permute.xlu0 %v117
    %120 = vperm.xlu0 %119, %v115
    %v121 = vpop.permute.xlu0 %120
    %v122 = vperm.slane %v36, 1
    %v123 = vlaneseq
    %v124 = vshrl.u32 %v123, 7
    %126 = vset.pattern.permute.xlu0 %v124
    %127 = vperm.xlu0 %126, %v122
    %v128 = vpop.permute.xlu0 %127
    %v129 = vmul.f32 %v121, %v33
    %v130 = vmul.f32 %v128, %v34
    %v131 = vsel %vm66, %v129, 0.0
    %v132 = vrot.slane %v131, 4
    %v133 = vadd.f32 %v131, %v132
    %v134 = vrot.slane %v133, 2
    %v135 = vadd.f32 %v133, %v134
    %v136 = vrot.slane %v135, 1
    %v137 = vadd.f32 %v135, %v136
    %v138 = vsel %vm66, %v130, 0.0
    %v139 = vrot.slane %v138, 4
    %v140 = vadd.f32 %v138, %v139
    %v141 = vrot.slane %v140, 2
    %v142 = vadd.f32 %v140, %v141
    %v143 = vrot.slane %v142, 1
    %v144 = vadd.f32 %v142, %v143
    %v146 = vrot.slane %v49, 1
    %v149 = vrcp.pop %v49
    %v150 = vmul.f32 %v49, %v149
    %v151 = vsub.f32 1.0, %v150
    %v152 = vmul.f32 %v149, %v151
    %v153 = vadd.f32 %v149, %v152
    %vm154 = vweird.f32 %v49
    %vm155 = vweird.f32 %v149
    %vm156 = vmor %vm154, %vm155
    %v157 = vsel %vm156, %v149, %v153
    %v158 = vand.u32 2147483647, %v49
    %vm159 = vcmp.eq.f32.partialorder %v158, 8.507059e+37
    %v160 = vand.u32 %v49, 2147483648
    %v161 = vor.u32 1.1754944e-38, %v160
    %v162 = vsel %vm159, %v161, %v157
    %v163 = vmul.f32 %v137, %v162
    %v164 = vrcp.pop %v146
    %v165 = vmul.f32 %v146, %v164
    %v166 = vsub.f32 1.0, %v165
    %v167 = vmul.f32 %v164, %v166
    %v168 = vadd.f32 %v164, %v167
    %vm169 = vweird.f32 %v146
    %vm170 = vweird.f32 %v164
    %vm171 = vmor %vm169, %vm170
    %v172 = vsel %vm171, %v164, %v168
    %v173 = vand.u32 2147483647, %v146
    %vm174 = vcmp.eq.f32.partialorder %v173, 8.507059e+37
    %v175 = vand.u32 %v146, 2147483648
    %v176 = vor.u32 1.1754944e-38, %v175
    %v177 = vsel %vm174, %v176, %v172
    %v178 = vmul.f32 %v144, %v177
    %v179 = vld [vmem:[%s3] sm:$0xff]
    %v180 = vld [vmem:[%s3 + $0x8] sm:$0xff]
    %v181 = vld [vmem:[%s3 + $0x10] sm:$0xff]
    %v182 = vld [vmem:[%s3 + $0x18] sm:$0xff]
    %v183 = vld [vmem:[%s5] sm:$0xff]
    %v184 = vld [vmem:[%s5 + $0x8] sm:$0xff]
    %v185 = vld [vmem:[%s5 + $0x10] sm:$0xff]
    %v186 = vld [vmem:[%s5 + $0x18] sm:$0xff]
    %v187 = vtanh.pop %v33
    %v188 = vtanh.pop %v34
    %v189 = vld [vmem:[%s4] sm:$0x1]
    %v191 = vperm.slane %v189, 0
    %v195 = vrot.slane %v188, 7
    %vm196 = vcmask 1041409
    %v197 = vsel %vm196, %v195, %v187
    %v198 = vsel %vm66, %v197, 0
    %200 = vmatpush.msra.mxu0 0.0
    %201 = vmatpush.msra.mxu0 0.0
    %202 = vmatpush.msra.mxu0 0.0
    %203 = vmatpush.msra.mxu0 0.0
    %204 = vmatpush.msra.mxu0 0.0
    %205 = vmatpush.msra.mxu0 0.0
    %206 = vmatpush.msra.mxu0 0.0
    %207 = vmatpush.msra.mxu0 0.0
    %208 = vmatpush.msra.mxu0 0.0
    %209 = vmatpush.msra.mxu0 0.0
    %210 = vmatpush.msra.mxu0 0.0
    %211 = vmatpush.msra.mxu0 0.0
    %212 = vmatpush.msra.mxu0 %v182
    %213 = vmatpush.msra.mxu0 %v181
    %214 = vmatpush.msra.mxu0 %v180
    %215 = vmatpush.msra.mxu0 %v179
    %216 = vmatmul.f32.gmra.mxu0 %v198
    %v217 = vpop.f32.mrf.mxu0
    %v218 = vadd.f32 %v191, %v217
    %219 = vdwg.mxu0
    %v220 = vtanh.pop %v99
    %v221 = vtanh.pop %v114
    %v222 = vld [vmem:[%s6] sm:$0x1]
    %v224 = vperm.slane %v222, 0
    %v228 = vrot.slane %v221, 7
    %v229 = vsel %vm196, %v228, %v220
    %v230 = vsel %vm66, %v229, 0
    %232 = vmatpush.msra.mxu0 0.0
    %233 = vmatpush.msra.mxu0 0.0
    %234 = vmatpush.msra.mxu0 0.0
    %235 = vmatpush.msra.mxu0 0.0
    %236 = vmatpush.msra.mxu0 0.0
    %237 = vmatpush.msra.mxu0 0.0
    %238 = vmatpush.msra.mxu0 0.0
    %239 = vmatpush.msra.mxu0 0.0
    %240 = vmatpush.msra.mxu0 0.0
    %241 = vmatpush.msra.mxu0 0.0
    %242 = vmatpush.msra.mxu0 0.0
    %243 = vmatpush.msra.mxu0 0.0
    %244 = vmatpush.msra.mxu0 %v186
    %245 = vmatpush.msra.mxu0 %v185
    %246 = vmatpush.msra.mxu0 %v184
    %247 = vmatpush.msra.mxu0 %v183
    %248 = vmatmul.f32.gmra.mxu0 %v230
    %v249 = vpop.f32.mrf.mxu0
    %v250 = vadd.f32 %v224, %v249
    %251 = vdwg.mxu0
    %v252 = vtanh.pop %v163
    %v253 = vtanh.pop %v178
    %v256 = vrot.slane %v253, 7
    %v257 = vsel %vm196, %v256, %v252
    %v258 = vsel %vm66, %v257, 0
    %260 = vmatpush.msra.mxu0 0.0
    %261 = vmatpush.msra.mxu0 0.0
    %262 = vmatpush.msra.mxu0 0.0
    %263 = vmatpush.msra.mxu0 0.0
    %264 = vmatpush.msra.mxu0 0.0
    %265 = vmatpush.msra.mxu0 0.0
    %266 = vmatpush.msra.mxu0 0.0
    %267 = vmatpush.msra.mxu0 0.0
    %268 = vmatpush.msra.mxu0 0.0
    %269 = vmatpush.msra.mxu0 0.0
    %270 = vmatpush.msra.mxu0 0.0
    %271 = vmatpush.msra.mxu0 0.0
    %272 = vmatpush.msra.mxu0 %v186
    %273 = vmatpush.msra.mxu0 %v185
    %274 = vmatpush.msra.mxu0 %v184
    %275 = vmatpush.msra.mxu0 %v183
    %276 = vmatmul.f32.gmra.mxu0 %v258
    %v277 = vpop.f32.mrf.mxu0
    %v278 = vadd.f32 %v224, %v277
    %279 = vdwg.mxu0
    %v280 = vld [vmem:[%s7] sm:$0xff]
    %v281 = vld [vmem:[%s7 + $0x8] sm:$0xff]
    %v282 = vld [vmem:[%s7 + $0x10] sm:$0xff]
    %v283 = vld [vmem:[%s7 + $0x18] sm:$0xff]
    %v284 = vld [vmem:[%s7 + $0x20] sm:$0xff]
    %v285 = vld [vmem:[%s7 + $0x28] sm:$0xff]
    %v286 = vld [vmem:[%s7 + $0x30] sm:$0xff]
    %v287 = vld [vmem:[%s7 + $0x38] sm:$0xff]
    %v289 = vsel %vm66, %v250, 0
    %291 = vmatpush.msra.mxu0 0.0
    %292 = vmatpush.msra.mxu0 0.0
    %293 = vmatpush.msra.mxu0 0.0
    %294 = vmatpush.msra.mxu0 0.0
    %295 = vmatpush.msra.mxu0 0.0
    %296 = vmatpush.msra.mxu0 0.0
    %297 = vmatpush.msra.mxu0 0.0
    %298 = vmatpush.msra.mxu0 0.0
    %299 = vmatpush.msra.mxu0 0.0
    %300 = vmatpush.msra.mxu0 0.0
    %301 = vmatpush.msra.mxu0 0.0
    %302 = vmatpush.msra.mxu0 0.0
    %303 = vmatpush.msra.mxu0 %v287
    %304 = vmatpush.msra.mxu0 %v286
    %305 = vmatpush.msra.mxu0 %v285
    %306 = vmatpush.msra.mxu0 %v284
    %307 = vmatmul.f32.gmra.mxu0 %v289
    %v308 = vpop.f32.mrf.mxu0
    %v309 = vadd.f32 0.0, %v308
    %310 = vdwg.mxu0
    %v312 = vsel %vm66, %v218, 0
    %314 = vmatpush.msra.mxu0 0.0
    %315 = vmatpush.msra.mxu0 0.0
    %316 = vmatpush.msra.mxu0 0.0
    %317 = vmatpush.msra.mxu0 0.0
    %318 = vmatpush.msra.mxu0 0.0
    %319 = vmatpush.msra.mxu0 0.0
    %320 = vmatpush.msra.mxu0 0.0
    %321 = vmatpush.msra.mxu0 0.0
    %322 = vmatpush.msra.mxu0 0.0
    %323 = vmatpush.msra.mxu0 0.0
    %324 = vmatpush.msra.mxu0 0.0
    %325 = vmatpush.msra.mxu0 0.0
    %326 = vmatpush.msra.mxu0 %v283
    %327 = vmatpush.msra.mxu0 %v282
    %328 = vmatpush.msra.mxu0 %v281
    %329 = vmatpush.msra.mxu0 %v280
    %330 = vmatmul.f32.gmra.mxu0 %v312
    %v331 = vpop.f32.mrf.mxu0
    %v332 = vadd.f32 %v309, %v331
    %333 = vdwg.mxu0
    %v334 = vld [vmem:[%s7 + $0x40] sm:$0xff]
    %v335 = vld [vmem:[%s7 + $0x48] sm:$0xff]
    %v336 = vld [vmem:[%s7 + $0x50] sm:$0xff]
    %v337 = vld [vmem:[%s7 + $0x58] sm:$0xff]
    %v339 = vsel %vm66, %v278, 0
    %341 = vmatpush.msra.mxu0 0.0
    %342 = vmatpush.msra.mxu0 0.0
    %343 = vmatpush.msra.mxu0 0.0
    %344 = vmatpush.msra.mxu0 0.0
    %345 = vmatpush.msra.mxu0 0.0
    %346 = vmatpush.msra.mxu0 0.0
    %347 = vmatpush.msra.mxu0 0.0
    %348 = vmatpush.msra.mxu0 0.0
    %349 = vmatpush.msra.mxu0 0.0
    %350 = vmatpush.msra.mxu0 0.0
    %351 = vmatpush.msra.mxu0 0.0
    %352 = vmatpush.msra.mxu0 0.0
    %353 = vmatpush.msra.mxu0 %v337
    %354 = vmatpush.msra.mxu0 %v336
    %355 = vmatpush.msra.mxu0 %v335
    %356 = vmatpush.msra.mxu0 %v334
    %357 = vmatmul.f32.gmra.mxu0 %v339
    %v358 = vpop.f32.mrf.mxu0
    %v359 = vadd.f32 0.0, %v358
    %360 = vdwg.mxu0
    %v361 = vadd.f32 %v332, %v359
    %v362 = vld [vmem:[%s8] sm:$0x1]
    %v364 = vperm.slane %v362, 0
    %v366 = vadd.f32 %v361, %v364
    %vm367 = vcmask 25600
    %368 = vst.msk [vmem:[#allocation2] sm:$0x3] %vm367, %v366
    // Predicated region
    $region38: #{tpu_custom_call.1} parent=1 // pred_check
      _
    $region39: #{tpu_custom_call.1} parent=1 // pred_check_branch
      %370 = sbr.rel (0) target = $region41
    $region40: #{tpu_custom_call.1} parent=1 // pred_region
      %372 = vsyncadd [#allocation3], 0
      %s374 = sshll.u32 [#allocation2], 4
      %s375 = int_to_ptr.vmem [resolvable:$true] %s374
      %s376 = sshll.u32 %s9, 4
      %s377 = int_to_ptr.hbm [resolvable:$true] %s376
      %379 = dma.vmem_to_hbm [thread:$0]  %s375, 32, %s377, [#allocation3]
    $region41: #{tpu_custom_call.1} parent=1 // pred_fallthru
      _
    // Predicated region
    $region42: #{tpu_custom_call.1} parent=1 // pred_check
      _
    $region43: #{tpu_custom_call.1} parent=1 // pred_check_branch
      %381 = sbr.rel (0) target = $region45
    $region44: #{tpu_custom_call.1} parent=1 // pred_region
      %383 = dma.done [#allocation3], 32
    $region45: #{tpu_custom_call.1} parent=1 // pred_fallthru
      _
    %384 = vsyncpa [#allocation3], 1

</llo_original>
